<compile_context>
chip_gen: v7x
topology: tpu7x:2x2x1
jax: 0.10.0
libtpu: 0.0.40
codegen_flags: <defaults>
</compile_context>

<pallas_src>
import functools

import jax
import jax.numpy as jnp
import numpy as np
from jax.experimental import pallas as pl
from jax.experimental.pallas import tpu as pltpu


def _unnormalize(coord, T):
    """align_corners=False pixel-center unnormalization + border clamp."""
    Tf = float(T)
    return jnp.clip(((coord + 1.0) * Tf - 1.0) * 0.5, 0.0, Tf - 1.0)


def _dense_grid_sample_kernel(uv_ref, tex_ref, out_ref, *, T):
    """Dense path (small T).

    uv_ref : (2, tile_p)   f32   x in row 0, y in row 1
    tex_ref: (C, T*T)      f32   column index y*T + x
    out_ref: (C, tile_p)   f32
    """
    tile_p = out_ref.shape[-1]

    ix = _unnormalize(uv_ref[0:1, :], T)   # (1, tile_p)  x -> width  axis
    iy = _unnormalize(uv_ref[1:2, :], T)   # (1, tile_p)  y -> height axis

    # Tent bilinear weights on a small (T, tile_p) iota: 4 VALU ops per vreg,
    # exactly grid_sample's border-clamped weights (columns sum to 1).
    iota_f = jax.lax.broadcasted_iota(jnp.int32, (T, tile_p), 0).astype(jnp.float32)
    ox = jnp.maximum(1.0 - jnp.abs(iota_f - ix), 0.0)    # (T, tile_p)
    oy = jnp.maximum(1.0 - jnp.abs(iota_f - iy), 0.0)    # (T, tile_p)

    # Per-pixel outer product -> dense weight slab, row index y*T + x (matches
    # the (C, T*T) texture flattening).  The (T, T, tile_p) -> (T*T, tile_p)
    # collapse is layout-free because T % 8 == 0 on this path.
    w = (oy[:, None, :] * ox[None, :, :]).reshape(T * T, tile_p)

    # Single MXU matmul, K = T*T deep, result is only C sublanes.
    out_ref[...] = jnp.dot(tex_ref[...], w,
                           preferred_element_type=jnp.float32
                           ).astype(out_ref.dtype)


def _separable_grid_sample_kernel(uv_ref, tex_ref, out_ref, *, T, C):
    """Separable fallback (large T).

    uv_ref : (2, tile_p)   f32
    tex_ref: (C*T, T)      f32   row c*T + y holds texture[c, y, :]
    out_ref: (C, tile_p)   f32
    """
    tile_p = out_ref.shape[-1]

    ix = _unnormalize(uv_ref[0:1, :], T)
    iy = _unnormalize(uv_ref[1:2, :], T)

    iota_f = jax.lax.broadcasted_iota(jnp.int32, (T, tile_p), 0).astype(jnp.float32)
    ox = jnp.maximum(1.0 - jnp.abs(iota_f - ix), 0.0)    # (T, tile_p)
    oy = jnp.maximum(1.0 - jnp.abs(iota_f - iy), 0.0)    # (T, tile_p)

    # Stage 1 (MXU): contract the texture width axis against the x tent.
    #   (C*T, T) @ (T, tile_p) -> (C*T, tile_p)
    partial = jnp.dot(tex_ref[...], ox, preferred_element_type=jnp.float32)

    # Stage 2: weight each y row and reduce over y.
    partial = partial.reshape(C, T, tile_p)
    out_ref[...] = jnp.sum(partial * oy[None, :, :], axis=1).astype(out_ref.dtype)


_DENSE_WEIGHT_VMEM_BUDGET = 16 * 1024 * 1024   # bytes for the (T*T, tile_p) slab
_SEPARABLE_PARTIAL_BUDGET = 8 * 1024 * 1024    # bytes for the (C*T, tile_p) partial


def static_neural_texture_forward(uv_inputs, texture, *, tile_p=8192):
    """uv_inputs: (1, 2, H, W) float32 in ~[-1, 1]; texture: (1, C, T, T)."""
    b, two, H, W = uv_inputs.shape
    assert b == 1 and two == 2, "forward only implemented for batchsize==1"
    _, C, T, T_ = texture.shape
    assert T == T_
    P = H * W

    use_dense = (T <= 32) and (T % 8 == 0)

    # Clamp the pixel tile: no bigger than the lane-rounded pixel count, and
    # no bigger than what keeps the in-kernel weight slab / stage-1 partial
    # inside a VMEM budget that fits every generation at the 32 MiB scoped
    # limit set below (incl. v5e and v7x's smaller physical VMEM).
    tile_p = max(128, min(int(tile_p), pl.cdiv(P, 128) * 128))
    if use_dense:
        cap = _DENSE_WEIGHT_VMEM_BUDGET // (T * T * 4)
    else:
        cap = _SEPARABLE_PARTIAL_BUDGET // (C * T * 4)
    cap = max(128, (cap // 128) * 128)
    tile_p = min(tile_p, cap)
    n_tiles = pl.cdiv(P, tile_p)   # ragged last block handled by Pallas masking

    uv_flat = uv_inputs.reshape(2, P).astype(jnp.float32)   # free reshape, no pad

    if use_dense:
        tex2 = texture.reshape(C, T * T).astype(jnp.float32)   # col index y*T + x
        kernel = functools.partial(_dense_grid_sample_kernel, T=T)
    else:
        tex2 = texture.reshape(C * T, T).astype(jnp.float32)   # row index c*T + y
        kernel = functools.partial(_separable_grid_sample_kernel, T=T, C=C)

    # Note: the texture block has a constant index_map so it is fetched once
    # and stays VMEM-resident.  pipeline_mode=pl.Buffered(1) on it would drop
    # its (tiny at small T) second pipeline buffer; skipped to keep lowering
    # maximally portable.  bf16 texture storage is skipped to preserve f32
    # parity with the PyTorch parameter.
    out_flat = pl.pallas_call(
        kernel,
        out_shape=jax.ShapeDtypeStruct((C, P), jnp.float32),
        grid_spec=pltpu.PrefetchScalarGridSpec(
            num_scalar_prefetch=0,
            grid=(n_tiles,),
            in_specs=[
                pl.BlockSpec((2, tile_p), lambda i: (0, i)),     # uv tile
                pl.BlockSpec(tex2.shape, lambda i: (0, 0)),      # resident texture
            ],
            out_specs=pl.BlockSpec((C, tile_p), lambda i: (0, i)),
        ),
        compiler_params=pltpu.CompilerParams(
            dimension_semantics=("parallel",),        # megacore-shardable pixel axis
            vmem_limit_bytes=32 * 1024 * 1024),
    )(uv_flat, tex2)

    return out_flat.reshape(1, C, H, W)   # free reshape, no slice


def _grid_sample_ref(texture, uv_inputs):
    """Pure-JAX reference matching torch.nn.functional.grid_sample
    (bilinear, border, align_corners=False) for batch size 1."""
    _, C, T, _ = texture.shape
    u = uv_inputs[0, 0]  # (H, W) x
    v = uv_inputs[0, 1]  # (H, W) y
    ix = jnp.clip(((u + 1.0) * T - 1.0) * 0.5, 0.0, T - 1.0)
    iy = jnp.clip(((v + 1.0) * T - 1.0) * 0.5, 0.0, T - 1.0)
    x0 = jnp.floor(ix).astype(jnp.int32)
    y0 = jnp.floor(iy).astype(jnp.int32)
    x1 = jnp.minimum(x0 + 1, T - 1)
    y1 = jnp.minimum(y0 + 1, T - 1)
    fx = ix - x0
    fy = iy - y0
    tex = texture[0]  # (C, T, T)

    def g(yy, xx):
        return tex[:, yy, xx]  # (C, H, W)

    out = (g(y0, x0) * (1 - fx) * (1 - fy)
           + g(y0, x1) * fx * (1 - fy)
           + g(y1, x0) * (1 - fx) * fy
           + g(y1, x1) * fx * fy)
    return out[None]


if __name__ == "__main__":
    # Module hyperparameters (small, consistent with __init__):
    texture_dimensions = 16   # T
    texture_features = 4      # C (out_ch)

    key = jax.random.PRNGKey(0)
    k_tex, k_uv1, k_uv2, k_tex3, k_uv3 = jax.random.split(key, 5)

    # Deterministic "random_init=True" texture parameter: (1, C, T, T).
    texture = jax.random.normal(
        k_tex, (1, texture_features, texture_dimensions, texture_dimensions),
        dtype=jnp.float32)

    # Case 1: 16x16 output, uv slightly beyond [-1, 1] to hit border padding
    # (dense MXU path, single grid step).
    H = W = 16
    uv_inputs = jax.random.uniform(
        k_uv1, (1, 2, H, W), dtype=jnp.float32, minval=-1.2, maxval=1.2)
    out = jax.block_until_ready(
        static_neural_texture_forward(uv_inputs, texture))
    ref = _grid_sample_ref(texture, uv_inputs)
    np.testing.assert_allclose(np.asarray(out), np.asarray(ref),
                               rtol=1e-5, atol=1e-5)

    # Case 2: ragged pixel count with multiple grid steps (24x24 = 576 pixels,
    # tile_p=256 -> 3 steps, masked ragged last block; dense path, no host
    # pad/slice).
    H2 = W2 = 24
    uv_inputs2 = jax.random.uniform(
        k_uv2, (1, 2, H2, W2), dtype=jnp.float32, minval=-1.2, maxval=1.2)
    out2 = jax.block_until_ready(
        static_neural_texture_forward(uv_inputs2, texture, tile_p=256))
    ref2 = _grid_sample_ref(texture, uv_inputs2)
    np.testing.assert_allclose(np.asarray(out2), np.asarray(ref2),
                               rtol=1e-5, atol=1e-5)

    # Case 3: larger texture (T=48 > 32) exercises the separable fallback,
    # with a pixel count (8x8 = 64) smaller than one lane-rounded tile.
    T3 = 48
    texture3 = jax.random.normal(
        k_tex3, (1, texture_features, T3, T3), dtype=jnp.float32)
    H3 = W3 = 8
    uv_inputs3 = jax.random.uniform(
        k_uv3, (1, 2, H3, W3), dtype=jnp.float32, minval=-1.2, maxval=1.2)
    out3 = jax.block_until_ready(
        static_neural_texture_forward(uv_inputs3, texture3))
    ref3 = _grid_sample_ref(texture3, uv_inputs3)
    np.testing.assert_allclose(np.asarray(out3), np.asarray(ref3),
                               rtol=1e-5, atol=1e-5)

    print("KERNEL_OK")
</pallas_src>

<mosaic_0001>
module attributes {stable_mosaic.version = 11 : i64} {
  func.func @_dense_grid_sample_kernel(%arg0: i32, %arg1: memref<2x256xf32, #tpu.memory_space<vmem>>, %arg2: memref<4x256xf32, #tpu.memory_space<vmem>>, %arg3: memref<4x256xf32, #tpu.memory_space<vmem>>) attributes {dimension_semantics = [#tpu.dimension_semantics<parallel>], iteration_bounds = array<i64: 1>, scalar_prefetch = 0 : i64, scratch_operands = 0 : i64, tpu.core_type = #tpu.core_type<tc>, window_params = [{transform_indices = @transform_0, window_bounds = array<i64: 2, 256>}, {pipeline_mode = #tpu.pipeline_mode<synchronous>, transform_indices = @transform_1, window_bounds = array<i64: 4, 256>}, {transform_indices = @transform_2, window_bounds = array<i64: 4, 256>}]} {
    %c0 = arith.constant 0 : index
    %c0_0 = arith.constant 0 : index
    %0 = vector.load %arg1[%c0, %c0_0] : memref<2x256xf32, #tpu.memory_space<vmem>>, vector<1x256xf32>
    %cst = arith.constant 1.000000e+00 : f32
    %1 = vector.broadcast %cst : f32 to vector<1x256xf32>
    %2 = arith.addf %0, %1 : vector<1x256xf32>
    %cst_1 = arith.constant 1.600000e+01 : f32
    %3 = vector.broadcast %cst_1 : f32 to vector<1x256xf32>
    %4 = arith.mulf %2, %3 : vector<1x256xf32>
    %cst_2 = arith.constant 1.000000e+00 : f32
    %5 = vector.broadcast %cst_2 : f32 to vector<1x256xf32>
    %6 = arith.subf %4, %5 : vector<1x256xf32>
    %cst_3 = arith.constant 5.000000e-01 : f32
    %7 = vector.broadcast %cst_3 : f32 to vector<1x256xf32>
    %8 = arith.mulf %6, %7 : vector<1x256xf32>
    %cst_4 = arith.constant 0.000000e+00 : f32
    %cst_5 = arith.constant 1.500000e+01 : f32
    %9 = vector.broadcast %cst_4 : f32 to vector<1x256xf32>
    %10 = arith.maximumf %9, %8 : vector<1x256xf32>
    %11 = vector.broadcast %cst_5 : f32 to vector<1x256xf32>
    %12 = arith.minimumf %11, %10 : vector<1x256xf32>
    %c1 = arith.constant 1 : index
    %c0_6 = arith.constant 0 : index
    %13 = vector.load %arg1[%c1, %c0_6] : memref<2x256xf32, #tpu.memory_space<vmem>>, vector<1x256xf32>
    %cst_7 = arith.constant 1.000000e+00 : f32
    %14 = vector.broadcast %cst_7 : f32 to vector<1x256xf32>
    %15 = arith.addf %13, %14 : vector<1x256xf32>
    %cst_8 = arith.constant 1.600000e+01 : f32
    %16 = vector.broadcast %cst_8 : f32 to vector<1x256xf32>
    %17 = arith.mulf %15, %16 : vector<1x256xf32>
    %cst_9 = arith.constant 1.000000e+00 : f32
    %18 = vector.broadcast %cst_9 : f32 to vector<1x256xf32>
    %19 = arith.subf %17, %18 : vector<1x256xf32>
    %cst_10 = arith.constant 5.000000e-01 : f32
    %20 = vector.broadcast %cst_10 : f32 to vector<1x256xf32>
    %21 = arith.mulf %19, %20 : vector<1x256xf32>
    %cst_11 = arith.constant 0.000000e+00 : f32
    %cst_12 = arith.constant 1.500000e+01 : f32
    %22 = vector.broadcast %cst_11 : f32 to vector<1x256xf32>
    %23 = arith.maximumf %22, %21 : vector<1x256xf32>
    %24 = vector.broadcast %cst_12 : f32 to vector<1x256xf32>
    %25 = arith.minimumf %24, %23 : vector<1x256xf32>
    %26 = tpu.iota {dimensions = array<i32: 0>} : vector<16x256xi32>
    %27 = arith.sitofp %26 : vector<16x256xi32> to vector<16x256xf32>
    %28 = vector.broadcast %12 : vector<1x256xf32> to vector<16x256xf32>
    %29 = arith.subf %27, %28 : vector<16x256xf32>
    %30 = math.absf %29 : vector<16x256xf32>
    %cst_13 = arith.constant 1.000000e+00 : f32
    %31 = vector.broadcast %cst_13 : f32 to vector<16x256xf32>
    %32 = arith.subf %31, %30 : vector<16x256xf32>
    %cst_14 = arith.constant 0.000000e+00 : f32
    %33 = vector.broadcast %cst_14 : f32 to vector<16x256xf32>
    %34 = arith.maximumf %32, %33 : vector<16x256xf32>
    %35 = vector.broadcast %25 : vector<1x256xf32> to vector<16x256xf32>
    %36 = arith.subf %27, %35 : vector<16x256xf32>
    %37 = math.absf %36 : vector<16x256xf32>
    %cst_15 = arith.constant 1.000000e+00 : f32
    %38 = vector.broadcast %cst_15 : f32 to vector<16x256xf32>
    %39 = arith.subf %38, %37 : vector<16x256xf32>
    %cst_16 = arith.constant 0.000000e+00 : f32
    %40 = vector.broadcast %cst_16 : f32 to vector<16x256xf32>
    %41 = arith.maximumf %39, %40 : vector<16x256xf32>
    %42 = vector.shape_cast %41 : vector<16x256xf32> to vector<16x1x256xf32>
    %43 = vector.shape_cast %34 : vector<16x256xf32> to vector<1x16x256xf32>
    %44 = vector.broadcast %42 : vector<16x1x256xf32> to vector<16x16x256xf32>
    %45 = vector.broadcast %43 : vector<1x16x256xf32> to vector<16x16x256xf32>
    %46 = arith.mulf %44, %45 : vector<16x16x256xf32>
    %47 = vector.shape_cast %46 : vector<16x16x256xf32> to vector<256x256xf32>
    %c0_17 = arith.constant 0 : index
    %c0_18 = arith.constant 0 : index
    %48 = vector.load %arg2[%c0_17, %c0_18] : memref<4x256xf32, #tpu.memory_space<vmem>>, vector<4x256xf32>
    %cst_19 = arith.constant dense<0.000000e+00> : vector<4x256xf32>
    %49 = tpu.matmul %48, %47, %cst_19 {dimension_numbers = #tpu.dot_dimension_numbers<[1], [0], [0], [1], [0, 0, 1, 1], [], []>} : vector<4x256xf32>, vector<256x256xf32>, vector<4x256xf32> -> vector<4x256xf32>
    %c0_20 = arith.constant 0 : index
    %c0_21 = arith.constant 0 : index
    %50 = vector.load %arg3[%c0_20, %c0_21] : memref<4x256xf32, #tpu.memory_space<vmem>>, vector<4x256xf32>
    tpu.vector_store %arg3[%c0_20, %c0_21], %49 {strides = array<i32>} : memref<4x256xf32, #tpu.memory_space<vmem>>, vector<4x256xf32>,
    return
  }
  func.func @transform_0(%arg0: i32) -> (i32, i32) {
    %c0_i32 = arith.constant 0 : i32
    %c0_i32_0 = arith.constant 0 : i32
    return %c0_i32, %arg0 : i32, i32
  }
  func.func @transform_1(%arg0: i32) -> (i32, i32) {
    %c0_i32 = arith.constant 0 : i32
    %c0_i32_0 = arith.constant 0 : i32
    %c0_i32_1 = arith.constant 0 : i32
    return %c0_i32, %c0_i32_0 : i32, i32
  }
  func.func @transform_2(%arg0: i32) -> (i32, i32) {
    %c0_i32 = arith.constant 0 : i32
    %c0_i32_0 = arith.constant 0 : i32
    return %c0_i32, %arg0 : i32, i32
  }
}

</mosaic_0001>

<llo_original>
// kernel: tpu_custom_call.1
$region0: #{tpu_custom_call.1}
  #allocation0 [shape = 'u32[]', space=smem, size = 0x4, offset = 0x4, fixed_abs, tag = 'smem constant byte address 0x4 - core index']
  #allocation1 [shape = 'u32[144,128]{1,0:T(1,128)}', space=vmem, size = 0x12000, scoped, tag = 'internal scratch']
  %s0 = inlined_call_operand.hbm [shape: f32[2,256], index: 0, kind: input, shape index: {}]
  %s1 = inlined_call_operand.hbm [shape: f32[4,256], index: 1, kind: input, shape index: {}]
  %s2 = inlined_call_operand.hbm [shape: f32[4,256], index: 2, kind: output, shape index: {}]
  %s3 = sld [smem:[#allocation0]]
  $region26: #{tpu_custom_call.1} parent=0
    _
  %s5 = ssub.s32 1, %s3
  %s6 = scalar_select 0, %s5, %s3
  $region1: #{tpu_custom_call.1} parent=0
    #allocation2 [shape = 'u8[2048]{0}', space=vmem, size = 0x800, scoped, tag = 'input window, operand 0, single buffered']
    #allocation3 [shape = 's32[1]{0}', space=sflag, size = 0x4, scoped, tag = 'scoped memory for tpu_custom_call.1']
    #allocation4 [shape = 's32[1]{0}', space=sflag, size = 0x4, scoped, tag = 'scoped memory for tpu_custom_call.1']
    #allocation5 [shape = 'u8[4096]{0}', space=vmem, size = 0x1000, scoped, tag = 'input window, operand 1, single buffered']
    #allocation6 [shape = 's32[1]{0}', space=sflag, size = 0x4, scoped, tag = 'scoped memory for tpu_custom_call.1']
    #allocation7 [shape = 'u8[4096]{0}', space=vmem, size = 0x1000, scoped, tag = 'output window, operand 0, single buffered']
    %7 = vsyncpa [#allocation3], 0
    %8 = vsyncpa [#allocation6], 0
    %9 = vsyncpa [#allocation4], 0
    // Predicated region
    $region2: #{tpu_custom_call.1} parent=1 // pred_check
      _
    $region3: #{tpu_custom_call.1} parent=1 // pred_check_branch
      %11 = sbr.rel (0) target = $region5
    $region4: #{tpu_custom_call.1} parent=1 // pred_region
      %s13 = ssub.s32 64, 64
      %14 = vsyncadd [#allocation3], %s13
      %s16 = sshll.u32 [#allocation2], 4
      %s17 = int_to_ptr.vmem [resolvable:$true] %s16
      %19 = dma.hbm_to_vmem [thread:$0]  %s0, 64, %s17, [#allocation3]
    $region5: #{tpu_custom_call.1} parent=1 // pred_fallthru
      _
    // Predicated region
    $region6: #{tpu_custom_call.1} parent=1 // pred_check
      _
    $region7: #{tpu_custom_call.1} parent=1 // pred_check_branch
      %21 = sbr.rel (0) target = $region9
    $region8: #{tpu_custom_call.1} parent=1 // pred_region
      %s23 = ssub.s32 128, 128
      %24 = vsyncadd [#allocation6], %s23
      %s26 = sshll.u32 [#allocation5], 4
      %s27 = int_to_ptr.vmem [resolvable:$true] %s26
      %29 = dma.hbm_to_vmem [thread:$0]  %s1, 128, %s27, [#allocation6]
    $region9: #{tpu_custom_call.1} parent=1 // pred_fallthru
      _
    // Predicated region
    $region10: #{tpu_custom_call.1} parent=1 // pred_check
      _
    $region11: #{tpu_custom_call.1} parent=1 // pred_check_branch
      %31 = sbr.rel (0) target = $region13
    $region12: #{tpu_custom_call.1} parent=1 // pred_region
      %32 = dma.done [#allocation3], 64
    $region13: #{tpu_custom_call.1} parent=1 // pred_fallthru
      _
    // Predicated region
    $region14: #{tpu_custom_call.1} parent=1 // pred_check
      _
    $region15: #{tpu_custom_call.1} parent=1 // pred_check_branch
      %34 = sbr.rel (0) target = $region17
    $region16: #{tpu_custom_call.1} parent=1 // pred_region
      %35 = dma.done [#allocation6], 128
    $region17: #{tpu_custom_call.1} parent=1 // pred_fallthru
      _
    %v36 = vld [vmem:[#allocation2] ss:$2 sm:$0x3]
    %v37 = vadd.f32 %v36, 1.0
    %v38 = vmul.f32 %v37, 16.0
    %v39 = vsub.f32 %v38, 1.0
    %v40 = vmul.f32 %v39, 0.5
    %v41 = vmax.f32 %v40, 0.0
    %v42 = vmin.f32 %v41, 15.0
    %s43 = scalar_lea.vmem [#allocation2], 1
    %v44 = vld [vmem:[%s43] ss:$2 sm:$0x3]
    %v45 = vadd.f32 %v44, 1.0
    %v46 = vmul.f32 %v45, 16.0
    %v47 = vsub.f32 %v46, 1.0
    %v48 = vmul.f32 %v47, 0.5
    %v49 = vmax.f32 %v48, 0.0
    %v50 = vmin.f32 %v49, 15.0
    %v51 = vlaneseq
    %v52 = vshrl.u32 %v51, 7
    %v53 = vadd.s32 %v52, 8
    %v54 = vcvt.s32.f32 %v52
    %v55 = vcvt.s32.f32 %v53
    %v57 = vlaneseq
    %v58 = vshrl.u32 %v57, 7
    %v59 = vsub.s32 0, %v58
    %v60 = vrot.slane %v42, %v59
    %v61 = vlaneseq
    %v62 = vshrl.u32 %v61, 7
    %v63 = vsub.s32 1, %v62
    %v64 = vrot.slane %v42, %v63
    %v67 = vsub.f32 %v54, %v60
    %v68 = vsub.f32 %v54, %v64
    %v69 = vsub.f32 %v55, %v60
    %v70 = vsub.f32 %v55, %v64
    %v71 = vand.u32 2147483647, %v67
    %v72 = vand.u32 2147483647, %v68
    %v73 = vand.u32 2147483647, %v69
    %v74 = vand.u32 2147483647, %v70
    %v75 = vsub.f32 1.0, %v71
    %v76 = vsub.f32 1.0, %v72
    %v77 = vsub.f32 1.0, %v73
    %v78 = vsub.f32 1.0, %v74
    %v79 = vmax.f32 %v75, 0.0
    %v80 = vmax.f32 %v76, 0.0
    %v81 = vmax.f32 %v77, 0.0
    %v82 = vmax.f32 %v78, 0.0
    %v84 = vlaneseq
    %v85 = vshrl.u32 %v84, 7
    %v86 = vsub.s32 0, %v85
    %v87 = vrot.slane %v50, %v86
    %v88 = vlaneseq
    %v89 = vshrl.u32 %v88, 7
    %v90 = vsub.s32 1, %v89
    %v91 = vrot.slane %v50, %v90
    %v94 = vsub.f32 %v54, %v87
    %v95 = vsub.f32 %v54, %v91
    %v96 = vsub.f32 %v55, %v87
    %v97 = vsub.f32 %v55, %v91
    %v98 = vand.u32 2147483647, %v94
    %v99 = vand.u32 2147483647, %v95
    %v100 = vand.u32 2147483647, %v96
    %v101 = vand.u32 2147483647, %v97
    %v102 = vsub.f32 1.0, %v98
    %v103 = vsub.f32 1.0, %v99
    %v104 = vsub.f32 1.0, %v100
    %v105 = vsub.f32 1.0, %v101
    %v106 = vmax.f32 %v102, 0.0
    %v107 = vmax.f32 %v103, 0.0
    %v108 = vmax.f32 %v104, 0.0
    %v109 = vmax.f32 %v105, 0.0
    %v114 = vcombine.low %v106, %v107
    %v115 = vcombine.high %v106, %v107
    %v117 = vunpack.c.l.s4 1966171168
    %v118 = vunpack.c.0.s8 %v117
    %v119 = vlaneseq
    %v120 = vshrl.u32 %v119, 7
    %v121 = vsub.s32 %v118, %v120
    %v122 = vrot.slane %v114, %v121
    %v124 = vunpack.c.l.s4 1966171168
    %v125 = vunpack.c.0.s8 %v124
    %v126 = vlaneseq
    %v127 = vshrl.u32 %v126, 7
    %v128 = vsub.s32 %v125, %v127
    %v129 = vrot.slane %v115, %v128
    %v130 = vcombine.high %v122, %v122
    %v131 = vcombine.high %v129, %v129
    %v133 = vunpack.c.l.s4 1966171168
    %v134 = vunpack.c.0.s8 %v133
    %v135 = vlaneseq
    %v136 = vshrl.u32 %v135, 7
    %v137 = vsub.s32 %v134, %v136
    %v138 = vrot.slane %v122, %v137
    %v140 = vunpack.c.l.s4 1966171168
    %v141 = vunpack.c.0.s8 %v140
    %v142 = vlaneseq
    %v143 = vshrl.u32 %v142, 7
    %v144 = vsub.s32 %v141, %v143
    %v145 = vrot.slane %v129, %v144
    %v147 = vunpack.c.l.s4 1966171168
    %v148 = vunpack.c.0.s8 %v147
    %v149 = vlaneseq
    %v150 = vshrl.u32 %v149, 7
    %v151 = vsub.s32 %v148, %v150
    %v152 = vrot.slane %v130, %v151
    %v154 = vunpack.c.l.s4 1966171168
    %v155 = vunpack.c.0.s8 %v154
    %v156 = vlaneseq
    %v157 = vshrl.u32 %v156, 7
    %v158 = vsub.s32 %v155, %v157
    %v159 = vrot.slane %v131, %v158
    %v160 = vcombine.high %v138, %v138
    %v161 = vcombine.high %v145, %v145
    %v162 = vcombine.high %v152, %v152
    %v163 = vcombine.high %v159, %v159
    %v164 = vcombine.low %v108, %v109
    %v165 = vcombine.high %v108, %v109
    %v167 = vunpack.c.l.s4 1966171168
    %v168 = vunpack.c.0.s8 %v167
    %v169 = vlaneseq
    %v170 = vshrl.u32 %v169, 7
    %v171 = vsub.s32 %v168, %v170
    %v172 = vrot.slane %v164, %v171
    %v174 = vunpack.c.l.s4 1966171168
    %v175 = vunpack.c.0.s8 %v174
    %v176 = vlaneseq
    %v177 = vshrl.u32 %v176, 7
    %v178 = vsub.s32 %v175, %v177
    %v179 = vrot.slane %v165, %v178
    %v180 = vcombine.high %v172, %v172
    %v181 = vcombine.high %v179, %v179
    %v183 = vunpack.c.l.s4 1966171168
    %v184 = vunpack.c.0.s8 %v183
    %v185 = vlaneseq
    %v186 = vshrl.u32 %v185, 7
    %v187 = vsub.s32 %v184, %v186
    %v188 = vrot.slane %v172, %v187
    %v190 = vunpack.c.l.s4 1966171168
    %v191 = vunpack.c.0.s8 %v190
    %v192 = vlaneseq
    %v193 = vshrl.u32 %v192, 7
    %v194 = vsub.s32 %v191, %v193
    %v195 = vrot.slane %v179, %v194
    %v197 = vunpack.c.l.s4 1966171168
    %v198 = vunpack.c.0.s8 %v197
    %v199 = vlaneseq
    %v200 = vshrl.u32 %v199, 7
    %v201 = vsub.s32 %v198, %v200
    %v202 = vrot.slane %v180, %v201
    %v204 = vunpack.c.l.s4 1966171168
    %v205 = vunpack.c.0.s8 %v204
    %v206 = vlaneseq
    %v207 = vshrl.u32 %v206, 7
    %v208 = vsub.s32 %v205, %v207
    %v209 = vrot.slane %v181, %v208
    %v210 = vcombine.high %v188, %v188
    %v211 = vcombine.high %v195, %v195
    %v212 = vcombine.high %v202, %v202
    %v213 = vcombine.high %v209, %v209
    %v214 = vlaneseq
    %v215 = vshrl.u32 %v214, 7
    %v216 = vsub.s32 0, %v215
    %v217 = vrot.slane %v138, %v216
    %v218 = vlaneseq
    %v219 = vshrl.u32 %v218, 7
    %v220 = vsub.s32 1, %v219
    %v221 = vrot.slane %v138, %v220
    %v222 = vlaneseq
    %v223 = vshrl.u32 %v222, 7
    %v224 = vsub.s32 0, %v223
    %v225 = vrot.slane %v152, %v224
    %v226 = vlaneseq
    %v227 = vshrl.u32 %v226, 7
    %v228 = vsub.s32 1, %v227
    %v229 = vrot.slane %v152, %v228
    %v230 = vlaneseq
    %v231 = vshrl.u32 %v230, 7
    %v232 = vsub.s32 0, %v231
    %v233 = vrot.slane %v160, %v232
    %v234 = vlaneseq
    %v235 = vshrl.u32 %v234, 7
    %v236 = vsub.s32 1, %v235
    %v237 = vrot.slane %v160, %v236
    %v238 = vlaneseq
    %v239 = vshrl.u32 %v238, 7
    %v240 = vsub.s32 0, %v239
    %v241 = vrot.slane %v162, %v240
    %v242 = vlaneseq
    %v243 = vshrl.u32 %v242, 7
    %v244 = vsub.s32 1, %v243
    %v245 = vrot.slane %v162, %v244
    %v246 = vlaneseq
    %v247 = vshrl.u32 %v246, 7
    %v248 = vsub.s32 0, %v247
    %v249 = vrot.slane %v145, %v248
    %v250 = vlaneseq
    %v251 = vshrl.u32 %v250, 7
    %v252 = vsub.s32 1, %v251
    %v253 = vrot.slane %v145, %v252
    %v254 = vlaneseq
    %v255 = vshrl.u32 %v254, 7
    %v256 = vsub.s32 0, %v255
    %v257 = vrot.slane %v159, %v256
    %v258 = vlaneseq
    %v259 = vshrl.u32 %v258, 7
    %v260 = vsub.s32 1, %v259
    %v261 = vrot.slane %v159, %v260
    %v262 = vlaneseq
    %v263 = vshrl.u32 %v262, 7
    %v264 = vsub.s32 0, %v263
    %v265 = vrot.slane %v161, %v264
    %v266 = vlaneseq
    %v267 = vshrl.u32 %v266, 7
    %v268 = vsub.s32 1, %v267
    %v269 = vrot.slane %v161, %v268
    %v270 = vlaneseq
    %v271 = vshrl.u32 %v270, 7
    %v272 = vsub.s32 0, %v271
    %v273 = vrot.slane %v163, %v272
    %v274 = vlaneseq
    %v275 = vshrl.u32 %v274, 7
    %v276 = vsub.s32 1, %v275
    %v277 = vrot.slane %v163, %v276
    %v278 = vlaneseq
    %v279 = vshrl.u32 %v278, 7
    %v280 = vsub.s32 0, %v279
    %v281 = vrot.slane %v188, %v280
    %v282 = vlaneseq
    %v283 = vshrl.u32 %v282, 7
    %v284 = vsub.s32 1, %v283
    %v285 = vrot.slane %v188, %v284
    %v286 = vlaneseq
    %v287 = vshrl.u32 %v286, 7
    %v288 = vsub.s32 0, %v287
    %v289 = vrot.slane %v202, %v288
    %v290 = vlaneseq
    %v291 = vshrl.u32 %v290, 7
    %v292 = vsub.s32 1, %v291
    %v293 = vrot.slane %v202, %v292
    %v294 = vlaneseq
    %v295 = vshrl.u32 %v294, 7
    %v296 = vsub.s32 0, %v295
    %v297 = vrot.slane %v210, %v296
    %v298 = vlaneseq
    %v299 = vshrl.u32 %v298, 7
    %v300 = vsub.s32 1, %v299
    %v301 = vrot.slane %v210, %v300
    %v302 = vlaneseq
    %v303 = vshrl.u32 %v302, 7
    %v304 = vsub.s32 0, %v303
    %v305 = vrot.slane %v212, %v304
    %v306 = vlaneseq
    %v307 = vshrl.u32 %v306, 7
    %v308 = vsub.s32 1, %v307
    %v309 = vrot.slane %v212, %v308
    %v310 = vlaneseq
    %v311 = vshrl.u32 %v310, 7
    %v312 = vsub.s32 0, %v311
    %v313 = vrot.slane %v195, %v312
    %v314 = vlaneseq
    %v315 = vshrl.u32 %v314, 7
    %v316 = vsub.s32 1, %v315
    %v317 = vrot.slane %v195, %v316
    %v318 = vlaneseq
    %v319 = vshrl.u32 %v318, 7
    %v320 = vsub.s32 0, %v319
    %v321 = vrot.slane %v209, %v320
    %v322 = vlaneseq
    %v323 = vshrl.u32 %v322, 7
    %v324 = vsub.s32 1, %v323
    %v325 = vrot.slane %v209, %v324
    %v326 = vlaneseq
    %v327 = vshrl.u32 %v326, 7
    %v328 = vsub.s32 0, %v327
    %v329 = vrot.slane %v211, %v328
    %v330 = vlaneseq
    %v331 = vshrl.u32 %v330, 7
    %v332 = vsub.s32 1, %v331
    %v333 = vrot.slane %v211, %v332
    %v334 = vlaneseq
    %v335 = vshrl.u32 %v334, 7
    %v336 = vsub.s32 0, %v335
    %v337 = vrot.slane %v213, %v336
    %v338 = vlaneseq
    %v339 = vshrl.u32 %v338, 7
    %v340 = vsub.s32 1, %v339
    %v341 = vrot.slane %v213, %v340
    %v374 = vmul.f32 %v217, %v79
    %v375 = vmul.f32 %v221, %v80
    %v376 = vmul.f32 %v217, %v81
    %v377 = vmul.f32 %v221, %v82
    %v378 = vmul.f32 %v225, %v79
    %v379 = vmul.f32 %v229, %v80
    %v380 = vmul.f32 %v225, %v81
    %v381 = vmul.f32 %v229, %v82
    %v382 = vmul.f32 %v233, %v79
    %v383 = vmul.f32 %v237, %v80
    %v384 = vmul.f32 %v233, %v81
    %v385 = vmul.f32 %v237, %v82
    %v386 = vmul.f32 %v241, %v79
    %v387 = vmul.f32 %v245, %v80
    %v388 = vmul.f32 %v241, %v81
    %v389 = vmul.f32 %v245, %v82
    %v390 = vmul.f32 %v249, %v79
    %v391 = vmul.f32 %v253, %v80
    %v392 = vmul.f32 %v249, %v81
    %v393 = vmul.f32 %v253, %v82
    %v394 = vmul.f32 %v257, %v79
    %v395 = vmul.f32 %v261, %v80
    %v396 = vmul.f32 %v257, %v81
    %v397 = vmul.f32 %v261, %v82
    %v398 = vmul.f32 %v265, %v79
    %v399 = vmul.f32 %v269, %v80
    %v400 = vmul.f32 %v265, %v81
    %v401 = vmul.f32 %v269, %v82
    %v402 = vmul.f32 %v273, %v79
    %v403 = vmul.f32 %v277, %v80
    %v404 = vmul.f32 %v273, %v81
    %v405 = vmul.f32 %v277, %v82
    %v406 = vmul.f32 %v281, %v79
    %v407 = vmul.f32 %v285, %v80
    %v408 = vmul.f32 %v281, %v81
    %v409 = vmul.f32 %v285, %v82
    %v410 = vmul.f32 %v289, %v79
    %v411 = vmul.f32 %v293, %v80
    %v412 = vmul.f32 %v289, %v81
    %v413 = vmul.f32 %v293, %v82
    %v414 = vmul.f32 %v297, %v79
    %v415 = vmul.f32 %v301, %v80
    %v416 = vmul.f32 %v297, %v81
    %v417 = vmul.f32 %v301, %v82
    %v418 = vmul.f32 %v305, %v79
    %v419 = vmul.f32 %v309, %v80
    %v420 = vmul.f32 %v305, %v81
    %v421 = vmul.f32 %v309, %v82
    %v422 = vmul.f32 %v313, %v79
    %v423 = vmul.f32 %v317, %v80
    %v424 = vmul.f32 %v313, %v81
    %v425 = vmul.f32 %v317, %v82
    %v426 = vmul.f32 %v321, %v79
    %v427 = vmul.f32 %v325, %v80
    %v428 = vmul.f32 %v321, %v81
    %v429 = vmul.f32 %v325, %v82
    %v430 = vmul.f32 %v329, %v79
    %v431 = vmul.f32 %v333, %v80
    %v432 = vmul.f32 %v329, %v81
    %v433 = vmul.f32 %v333, %v82
    %v434 = vmul.f32 %v337, %v79
    %v435 = vmul.f32 %v341, %v80
    %v436 = vmul.f32 %v337, %v81
    %v437 = vmul.f32 %v341, %v82
    %v438 = vld [vmem:[#allocation5] sm:$0xff]
    %v440 = vcombine.high %v438, %v438
    %442 = vmatprep.subr.mxu0 %v375
    %443 = vmatpush1.msra.mxu0 %v374
    %444 = vmatprep.subr.mxu0 %v377
    %445 = vmatpush1.msra.mxu0 %v376
    %446 = vmatprep.subr.mxu0 %v379
    %447 = vmatpush1.msra.mxu0 %v378
    %448 = vmatprep.subr.mxu0 %v381
    %449 = vmatpush1.msra.mxu0 %v380
    %450 = vmatprep.subr.mxu0 %v383
    %451 = vmatpush1.msra.mxu0 %v382
    %452 = vmatprep.subr.mxu0 %v385
    %453 = vmatpush1.msra.mxu0 %v384
    %454 = vmatprep.subr.mxu0 %v387
    %455 = vmatpush1.msra.mxu0 %v386
    %456 = vmatprep.subr.mxu0 %v389
    %457 = vmatpush1.msra.mxu0 %v388
    %458 = vmatprep.subr.mxu0 %v391
    %459 = vmatpush1.msra.mxu0 %v390
    %460 = vmatprep.subr.mxu0 %v393
    %461 = vmatpush1.msra.mxu0 %v392
    %462 = vmatprep.subr.mxu0 %v395
    %463 = vmatpush1.msra.mxu0 %v394
    %464 = vmatprep.subr.mxu0 %v397
    %465 = vmatpush1.msra.mxu0 %v396
    %466 = vmatprep.subr.mxu0 %v399
    %467 = vmatpush1.msra.mxu0 %v398
    %468 = vmatprep.subr.mxu0 %v401
    %469 = vmatpush1.msra.mxu0 %v400
    %470 = vmatprep.subr.mxu0 %v403
    %471 = vmatpush1.msra.mxu0 %v402
    %472 = vmatprep.subr.mxu0 %v405
    %473 = vmatpush1.msra.mxu0 %v404
    %474 = vmatprep.subr.mxu0 %v407
    %475 = vmatpush1.msra.mxu0 %v406
    %476 = vmatprep.subr.mxu0 %v409
    %477 = vmatpush1.msra.mxu0 %v408
    %478 = vmatprep.subr.mxu0 %v411
    %479 = vmatpush1.msra.mxu0 %v410
    %480 = vmatprep.subr.mxu0 %v413
    %481 = vmatpush1.msra.mxu0 %v412
    %482 = vmatprep.subr.mxu0 %v415
    %483 = vmatpush1.msra.mxu0 %v414
    %484 = vmatprep.subr.mxu0 %v417
    %485 = vmatpush1.msra.mxu0 %v416
    %486 = vmatprep.subr.mxu0 %v419
    %487 = vmatpush1.msra.mxu0 %v418
    %488 = vmatprep.subr.mxu0 %v421
    %489 = vmatpush1.msra.mxu0 %v420
    %490 = vmatprep.subr.mxu0 %v423
    %491 = vmatpush1.msra.mxu0 %v422
    %492 = vmatprep.subr.mxu0 %v425
    %493 = vmatpush1.msra.mxu0 %v424
    %494 = vmatprep.subr.mxu0 %v427
    %495 = vmatpush1.msra.mxu0 %v426
    %496 = vmatprep.subr.mxu0 %v429
    %497 = vmatpush1.msra.mxu0 %v428
    %498 = vmatprep.subr.mxu0 %v431
    %499 = vmatpush1.msra.mxu0 %v430
    %500 = vmatprep.subr.mxu0 %v433
    %501 = vmatpush1.msra.mxu0 %v432
    %502 = vmatprep.subr.mxu0 %v435
    %503 = vmatpush1.msra.mxu0 %v434
    %504 = vmatprep.subr.mxu0 %v437
    %505 = vmatpush1.msra.mxu0 %v436
    %506 = vmatprep.mubr.f32.mxu0 %v440
    %507 = vmatmul.mubr.f32.gmra.mrb[0].mxu0 %v438
    %v508 = vpop.f32.mrb[0].mxu0
    %v509 = vadd.f32 0.0, %v508
    %v510 = vpop.f32.mrb[0].mxu0
    %v511 = vadd.f32 0.0, %v510
    %512 = vdwg.mxu0
    %v515 = vcombine.low %v509, %v511
    %517 = vst [vmem:[#allocation7] sm:$0xff] %v515
    // Predicated region
    $region18: #{tpu_custom_call.1} parent=1 // pred_check
      _
    $region19: #{tpu_custom_call.1} parent=1 // pred_check_branch
      %519 = sbr.rel (0) target = $region21
    $region20: #{tpu_custom_call.1} parent=1 // pred_region
      %s521 = ssub.s32 128, 128
      %522 = vsyncadd [#allocation4], %s521
      %s524 = sshll.u32 [#allocation7], 4
      %s525 = int_to_ptr.vmem [resolvable:$true] %s524
      %527 = dma.vmem_to_hbm [thread:$0]  %s525, 128, %s2, [#allocation4]
    $region21: #{tpu_custom_call.1} parent=1 // pred_fallthru
      _
    // Predicated region
    $region22: #{tpu_custom_call.1} parent=1 // pred_check
      _
    $region23: #{tpu_custom_call.1} parent=1 // pred_check_branch
      %529 = sbr.rel (0) target = $region25
    $region24: #{tpu_custom_call.1} parent=1 // pred_region
      %530 = dma.done [#allocation4], 128
    $region25: #{tpu_custom_call.1} parent=1 // pred_fallthru
      _
    %531 = vsyncpa [#allocation3], 1
    %532 = vsyncpa [#allocation6], 1
    %533 = vsyncpa [#allocation4], 1

</llo_original>
